<compile_context>
chip_gen: v7x
topology: tpu7x:2x2x1
jax: 0.10.0
libtpu: 0.0.40
codegen_flags: <defaults>
</compile_context>

<pallas_src>
import math
from functools import partial

import jax
import jax.numpy as jnp
from jax.experimental import pallas as pl
from jax.experimental.pallas import tpu as pltpu

SUBLANE = 8     # f32 sublane tile height
LANE = 128      # TPU lane width


def _round_up(x, m):
    return ((x + m - 1) // m) * m


def _slab_layout(sizes):
    """Row offsets of [emb, W_1, b_1, ..., W_L, b_L] in the packed slab.

    Each segment is padded up to an 8-row (sublane) boundary so every
    in-kernel slice starts on a tile boundary. Returns (offsets, rows, width).
    """
    width = _round_up(max(sizes[1:]), LANE)
    offs = []
    row = 0
    offs.append(row)
    row += _round_up(sizes[0], SUBLANE)                 # emb: (N, D0)
    for i in range(1, len(sizes) - 1):
        offs.append(row)
        row += _round_up(sizes[i], SUBLANE)             # W_i: (sizes[i], sizes[i+1])
        offs.append(row)
        row += SUBLANE                                  # b_i: (1, sizes[i+1])
    return tuple(offs), row, width


def _make_fused_kernel(sizes):
    """kernel(slab_ref, out_ref): full MLP + in-kernel ScaledTanh scale."""
    sizes = tuple(sizes)
    num_linear = len(sizes) - 2
    offs, _, _ = _slab_layout(sizes)

    def kernel(slab_ref, out_ref):
        # Embedding "lookup" of arange(N) == the full table (static slice view).
        x = slab_ref[offs[0]:offs[0] + sizes[0], :sizes[1]]
        k = 1
        for i in range(num_linear):
            fan_in, fan_out = sizes[i + 1], sizes[i + 2]
            w = slab_ref[offs[k]:offs[k] + fan_in, :fan_out]
            b = slab_ref[offs[k + 1]:offs[k + 1] + 1, :fan_out]
            k += 2
            x = jnp.dot(x, w, preferred_element_type=jnp.float32) + b
            if i < num_linear - 1:          # ReLU between hidden Linears only
                x = jnp.maximum(x, 0.0)

        # ScaledTanh scale, in-kernel (no host sync, no second pass):
        #   a = 1.7159 / max(|min(x)|, |max(x)|) == 1.7159 / max|x|.
        # Single fused reduce (XLU); divide via pl.reciprocal (EUP). The 1e-30
        # clamp only guards the degenerate all-zero case (PyTorch would 1/0).
        m = jnp.max(jnp.abs(x), keepdims=True)                       # (1, 1)
        a = jnp.float32(1.7159) * pl.reciprocal(
            jnp.maximum(m, jnp.float32(1e-30)), approx=False)
        out_ref[...] = jnp.tanh(x * a)      # exactly PyTorch's x.mul(a).tanh()

    return kernel


@partial(jax.jit, static_argnums=(1,))
def embedding_perceptron_forward(slab, sizes):
    """Single fused, single-block pallas_call: one input DMA, one output DMA."""
    sizes = tuple(sizes)
    return pl.pallas_call(
        _make_fused_kernel(sizes),
        out_shape=jax.ShapeDtypeStruct((sizes[0], sizes[-1]), jnp.float32),
        in_specs=[pl.BlockSpec(memory_space=pltpu.MemorySpace.VMEM)],
        out_specs=pl.BlockSpec(memory_space=pltpu.MemorySpace.VMEM),
    )(slab)


def init_params(sizes, key):
    """PyTorch-default init: Embedding ~ N(0,1); Linear ~ U(+-1/sqrt(fan_in)).
    Weights are stored [in_dim, out_dim] (transpose of PyTorch) so the kernel
    computes x @ W + b directly on the MXU."""
    num_linear = len(sizes) - 2
    keys = jax.random.split(key, 1 + 2 * num_linear)
    emb = jax.random.normal(keys[0], (sizes[0], sizes[1]), dtype=jnp.float32)
    weights, biases = [], []
    ki = 1
    for i in range(1, len(sizes) - 1):
        fan_in, fan_out = sizes[i], sizes[i + 1]
        bound = 1.0 / math.sqrt(fan_in)
        weights.append(jax.random.uniform(keys[ki], (fan_in, fan_out),
                                          minval=-bound, maxval=bound,
                                          dtype=jnp.float32))
        biases.append(jax.random.uniform(keys[ki + 1], (1, fan_out),
                                         minval=-bound, maxval=bound,
                                         dtype=jnp.float32))
        ki += 2
    return emb, weights, biases


def pack_params(sizes, emb, weights, biases):
    """Pack all parameters into one contiguous (rows, 128) f32 slab.

    Unused pad rows/columns are zero and are never read by the kernel."""
    offs, total_rows, width = _slab_layout(sizes)
    slab = jnp.zeros((total_rows, width), jnp.float32)
    slab = slab.at[offs[0]:offs[0] + sizes[0], :sizes[1]].set(emb)
    k = 1
    for w, b in zip(weights, biases):
        fan_in, fan_out = w.shape
        slab = slab.at[offs[k]:offs[k] + fan_in, :fan_out].set(w)
        slab = slab.at[offs[k + 1]:offs[k + 1] + 1, :fan_out].set(b)
        k += 2
    return slab


if __name__ == "__main__":
    # sizes = [N, D0, H, D_out]: Embedding(8, 32) -> Linear(32, 64) -> ReLU
    #         -> Linear(64, 16) -> ScaledTanh(a)
    sizes = (8, 32, 64, 16)
    key = jax.random.PRNGKey(0)

    emb, weights, biases = init_params(sizes, key)
    slab = pack_params(sizes, emb, weights, biases)   # (120, 128) f32, one DMA

    out = embedding_perceptron_forward(slab, sizes)
    out = jax.block_until_ready(out)

    assert out.shape == (sizes[0], sizes[-1])
    assert bool(jnp.all(jnp.isfinite(out)))
    # ScaledTanh is tanh(a*x) with a = 1.7159 / max|x_pre|, so |out| is bounded
    # by tanh(1.7159) ~= 0.937 and the extreme pre-tanh element maps onto it.
    max_abs = float(jnp.max(jnp.abs(out)))
    assert max_abs <= 1.0
    assert abs(max_abs - math.tanh(1.7159)) < 1e-3
    print("KERNEL_OK")
</pallas_src>

<mosaic_0001>
module attributes {stable_mosaic.version = 11 : i64} {
  func.func @kernel(%arg0: memref<120x128xf32, #tpu.memory_space<vmem>>, %arg1: memref<8x16xf32, #tpu.memory_space<vmem>>) attributes {dimension_semantics = [], scalar_prefetch = 0 : i64, scratch_operands = 0 : i64, tpu.core_type = #tpu.core_type<tc>} {
    %c0 = arith.constant 0 : index
    %c0_0 = arith.constant 0 : index
    %0 = vector.load %arg0[%c0, %c0_0] : memref<120x128xf32, #tpu.memory_space<vmem>>, vector<8x32xf32>
    %c8 = arith.constant 8 : index
    %c0_1 = arith.constant 0 : index
    %1 = vector.load %arg0[%c8, %c0_1] : memref<120x128xf32, #tpu.memory_space<vmem>>, vector<32x64xf32>
    %c40 = arith.constant 40 : index
    %c0_2 = arith.constant 0 : index
    %2 = vector.load %arg0[%c40, %c0_2] : memref<120x128xf32, #tpu.memory_space<vmem>>, vector<1x64xf32>
    %cst = arith.constant dense<0.000000e+00> : vector<8x64xf32>
    %3 = tpu.matmul %0, %1, %cst {dimension_numbers = #tpu.dot_dimension_numbers<[1], [0], [0], [1], [0, 0, 1, 1], [], []>} : vector<8x32xf32>, vector<32x64xf32>, vector<8x64xf32> -> vector<8x64xf32>
    %4 = vector.broadcast %2 : vector<1x64xf32> to vector<8x64xf32>
    %5 = arith.addf %3, %4 : vector<8x64xf32>
    %cst_3 = arith.constant 0.000000e+00 : f32
    %6 = vector.broadcast %cst_3 : f32 to vector<8x64xf32>
    %7 = arith.maximumf %5, %6 : vector<8x64xf32>
    %c48 = arith.constant 48 : index
    %c0_4 = arith.constant 0 : index
    %8 = vector.load %arg0[%c48, %c0_4] : memref<120x128xf32, #tpu.memory_space<vmem>>, vector<64x16xf32>
    %c112 = arith.constant 112 : index
    %c0_5 = arith.constant 0 : index
    %9 = vector.load %arg0[%c112, %c0_5] : memref<120x128xf32, #tpu.memory_space<vmem>>, vector<1x16xf32>
    %cst_6 = arith.constant dense<0.000000e+00> : vector<8x16xf32>
    %10 = tpu.matmul %7, %8, %cst_6 {dimension_numbers = #tpu.dot_dimension_numbers<[1], [0], [0], [1], [0, 0, 1, 1], [], []>} : vector<8x64xf32>, vector<64x16xf32>, vector<8x16xf32> -> vector<8x16xf32>
    %11 = vector.broadcast %9 : vector<1x16xf32> to vector<8x16xf32>
    %12 = arith.addf %10, %11 : vector<8x16xf32>
    %13 = math.absf %12 : vector<8x16xf32>
    %14 = vector.shape_cast %13 : vector<8x16xf32> to vector<1x8x16xf32>
    %cst_7 = arith.constant dense<0xFF800000> : vector<1xf32>
    %15 = vector.multi_reduction <maximumf>, %14, %cst_7 [1, 2] : vector<1x8x16xf32> to vector<1xf32>
    %16 = vector.shape_cast %15 : vector<1xf32> to vector<1x1x1xf32>
    %17 = vector.extract %16[0, 0, 0] : f32 from vector<1x1x1xf32>
    %18 = vector.broadcast %17 : f32 to vector<1x1xf32>
    %cst_8 = arith.constant 1.000000e-30 : f32
    %19 = vector.broadcast %cst_8 : f32 to vector<1x1xf32>
    %20 = arith.maximumf %18, %19 : vector<1x1xf32>
    %21 = tpu.reciprocal %20 : vector<1x1xf32> -> vector<1x1xf32>
    %cst_9 = arith.constant 1.715900e+00 : f32
    %22 = vector.broadcast %cst_9 : f32 to vector<1x1xf32>
    %23 = arith.mulf %22, %21 : vector<1x1xf32>
    %24 = vector.broadcast %23 : vector<1x1xf32> to vector<8x16xf32>
    %25 = arith.mulf %12, %24 : vector<8x16xf32>
    %26 = math.tanh %25 : vector<8x16xf32>
    %c0_10 = arith.constant 0 : index
    %c0_11 = arith.constant 0 : index
    %27 = vector.load %arg1[%c0_10, %c0_11] : memref<8x16xf32, #tpu.memory_space<vmem>>, vector<8x16xf32>
    tpu.vector_store %arg1[%c0_10, %c0_11], %26 {strides = array<i32>} : memref<8x16xf32, #tpu.memory_space<vmem>>, vector<8x16xf32>,
    return
  }
}

</mosaic_0001>

<llo_original>
// kernel: embedding_perceptron_forward.1
$region0: #{embedding_perceptron_forward.1}
  #allocation0 [shape = 'u32[]', space=smem, size = 0x4, offset = 0x4, fixed_abs, tag = 'smem constant byte address 0x4 - core index']
  #allocation1 [shape = 'u32[144,128]{1,0:T(1,128)}', space=vmem, size = 0x12000, scoped, tag = 'internal scratch']
  %s0 = inlined_call_operand.hbm [shape: f32[120,128], index: 0, kind: input, shape index: {}]
  %s1 = inlined_call_operand.hbm [shape: f32[8,16], index: 1, kind: output, shape index: {}]
  %s2 = sld [smem:[#allocation0]]
  $region18: #{embedding_perceptron_forward.1} parent=0
    _
  %s4 = ssub.s32 1, %s2
  %s5 = scalar_select 0, %s4, %s2
  $region1: #{embedding_perceptron_forward.1} parent=0
    #allocation2 [shape = 'u8[61440]{0}', space=vmem, size = 0xf000, scoped, tag = 'input window, operand 0, single buffered']
    #allocation3 [shape = 's32[1]{0}', space=sflag, size = 0x4, scoped, tag = 'scoped memory for embedding_perceptron_forward.1']
    #allocation4 [shape = 's32[1]{0}', space=sflag, size = 0x4, scoped, tag = 'scoped memory for embedding_perceptron_forward.1']
    #allocation5 [shape = 'u8[4096]{0}', space=vmem, size = 0x1000, scoped, tag = 'output window, operand 0, single buffered']
    %6 = vsyncpa [#allocation3], 0
    %7 = vsyncpa [#allocation4], 0
    // Predicated region
    $region2: #{embedding_perceptron_forward.1} parent=1 // pred_check
      _
    $region3: #{embedding_perceptron_forward.1} parent=1 // pred_check_branch
      %9 = sbr.rel (0) target = $region5
    $region4: #{embedding_perceptron_forward.1} parent=1 // pred_region
      %s11 = ssub.s32 1920, 1920
      %12 = vsyncadd [#allocation3], %s11
      %s13 = sshll.u32 [#allocation2], 4
      %s14 = int_to_ptr.vmem [resolvable:$true] %s13
      %19 = dma.hbm_to_vmem [thread:$0]  %s0, 1920, %s14, [#allocation3], 128, 128, 8
    $region5: #{embedding_perceptron_forward.1} parent=1 // pred_fallthru
      _
    // Predicated region
    $region6: #{embedding_perceptron_forward.1} parent=1 // pred_check
      _
    $region7: #{embedding_perceptron_forward.1} parent=1 // pred_check_branch
      %21 = sbr.rel (0) target = $region9
    $region8: #{embedding_perceptron_forward.1} parent=1 // pred_region
      %22 = dma.done [#allocation3], 1920
    $region9: #{embedding_perceptron_forward.1} parent=1 // pred_fallthru
      _
    %v23 = vld [vmem:[#allocation2] sm:$0xff]
    %v24 = vld [vmem:[#allocation2 + $0x8] sm:$0xff]
    %v25 = vld [vmem:[#allocation2 + $0x10] sm:$0xff]
    %v26 = vld [vmem:[#allocation2 + $0x18] sm:$0xff]
    %v27 = vld [vmem:[#allocation2 + $0x20] sm:$0xff]
    %v28 = vld [vmem:[#allocation2 + $0x28] sm:$0x1]
    %v29 = vlaneseq
    %v30 = vshrl.u32 %v29, 7
    %v31 = vsub.s32 0, %v30
    %v32 = vrot.slane %v28, %v31
    %vm33 = vcmask 261120
    %v35 = vsel %vm33, %v23, 0
    %37 = vmatprep.subr.mxu0 0.0
    %38 = vmatpush1.msra.mxu0 %v24
    %39 = vmatprep.subr.mxu0 0.0
    %40 = vmatpush1.msra.mxu0 %v25
    %41 = vmatprep.subr.mxu0 0.0
    %42 = vmatpush1.msra.mxu0 %v26
    %43 = vmatprep.subr.mxu0 0.0
    %44 = vmatpush1.msra.mxu0 %v27
    %45 = vmatprep.subr.mxu0 0.0
    %46 = vmatpush1.msra.mxu0 0.0
    %47 = vmatprep.subr.mxu0 0.0
    %48 = vmatpush1.msra.mxu0 0.0
    %49 = vmatprep.subr.mxu0 0.0
    %50 = vmatpush1.msra.mxu0 0.0
    %51 = vmatprep.subr.mxu0 0.0
    %52 = vmatpush1.msra.mxu0 0.0
    %53 = vmatprep.subr.mxu0 0.0
    %54 = vmatpush1.msra.mxu0 0.0
    %55 = vmatprep.subr.mxu0 0.0
    %56 = vmatpush1.msra.mxu0 0.0
    %57 = vmatprep.subr.mxu0 0.0
    %58 = vmatpush1.msra.mxu0 0.0
    %59 = vmatprep.subr.mxu0 0.0
    %60 = vmatpush1.msra.mxu0 0.0
    %61 = vmatprep.subr.mxu0 0.0
    %62 = vmatpush1.msra.mxu0 0.0
    %63 = vmatprep.subr.mxu0 0.0
    %64 = vmatpush1.msra.mxu0 0.0
    %65 = vmatprep.subr.mxu0 0.0
    %66 = vmatpush1.msra.mxu0 0.0
    %67 = vmatprep.subr.mxu0 0.0
    %68 = vmatpush1.msra.mxu0 0.0
    %69 = vmatprep.subr.mxu0 0.0
    %70 = vmatpush1.msra.mxu0 0.0
    %71 = vmatprep.subr.mxu0 0.0
    %72 = vmatpush1.msra.mxu0 0.0
    %73 = vmatprep.subr.mxu0 0.0
    %74 = vmatpush1.msra.mxu0 0.0
    %75 = vmatprep.subr.mxu0 0.0
    %76 = vmatpush1.msra.mxu0 0.0
    %77 = vmatprep.subr.mxu0 0.0
    %78 = vmatpush1.msra.mxu0 0.0
    %79 = vmatprep.subr.mxu0 0.0
    %80 = vmatpush1.msra.mxu0 0.0
    %81 = vmatprep.subr.mxu0 0.0
    %82 = vmatpush1.msra.mxu0 0.0
    %83 = vmatprep.subr.mxu0 0.0
    %84 = vmatpush1.msra.mxu0 0.0
    %85 = vmatprep.subr.mxu0 0.0
    %86 = vmatpush1.msra.mxu0 0.0
    %87 = vmatprep.subr.mxu0 0.0
    %88 = vmatpush1.msra.mxu0 0.0
    %89 = vmatprep.subr.mxu0 0.0
    %90 = vmatpush1.msra.mxu0 0.0
    %91 = vmatprep.subr.mxu0 0.0
    %92 = vmatpush1.msra.mxu0 0.0
    %93 = vmatprep.subr.mxu0 0.0
    %94 = vmatpush1.msra.mxu0 0.0
    %95 = vmatprep.subr.mxu0 0.0
    %96 = vmatpush1.msra.mxu0 0.0
    %97 = vmatprep.subr.mxu0 0.0
    %98 = vmatpush1.msra.mxu0 0.0
    %99 = vmatprep.subr.mxu0 0.0
    %100 = vmatpush1.msra.mxu0 0.0
    %101 = vmatprep.mubr.f32.mxu0 0.0
    %102 = vmatmul.mubr.f32.gmra.mrb[0].mxu0 %v35
    %v103 = vpop.f32.mrb[0].mxu0
    %v104 = vadd.f32 %v32, %v103
    %v105 = vpop.f32.mrb[0].mxu0
    %106 = vdwg.mxu0
    %v107 = vmax.f32 %v104, 0.0
    %v108 = vld [vmem:[#allocation2 + $0x30] sm:$0xff]
    %v109 = vld [vmem:[#allocation2 + $0x38] sm:$0xff]
    %v110 = vld [vmem:[#allocation2 + $0x40] sm:$0xff]
    %v111 = vld [vmem:[#allocation2 + $0x48] sm:$0xff]
    %v112 = vld [vmem:[#allocation2 + $0x50] sm:$0xff]
    %v113 = vld [vmem:[#allocation2 + $0x58] sm:$0xff]
    %v114 = vld [vmem:[#allocation2 + $0x60] sm:$0xff]
    %v115 = vld [vmem:[#allocation2 + $0x68] sm:$0xff]
    %v116 = vld [vmem:[#allocation2 + $0x70] sm:$0x1]
    %v117 = vlaneseq
    %v118 = vshrl.u32 %v117, 7
    %v119 = vsub.s32 0, %v118
    %v120 = vrot.slane %v116, %v119
    %vm121 = vcmask 523264
    %v123 = vsel %vm121, %v107, 0
    %125 = vmatprep.subr.mxu0 0.0
    %126 = vmatpush1.msra.mxu0 %v108
    %127 = vmatprep.subr.mxu0 0.0
    %128 = vmatpush1.msra.mxu0 %v109
    %129 = vmatprep.subr.mxu0 0.0
    %130 = vmatpush1.msra.mxu0 %v110
    %131 = vmatprep.subr.mxu0 0.0
    %132 = vmatpush1.msra.mxu0 %v111
    %133 = vmatprep.subr.mxu0 0.0
    %134 = vmatpush1.msra.mxu0 %v112
    %135 = vmatprep.subr.mxu0 0.0
    %136 = vmatpush1.msra.mxu0 %v113
    %137 = vmatprep.subr.mxu0 0.0
    %138 = vmatpush1.msra.mxu0 %v114
    %139 = vmatprep.subr.mxu0 0.0
    %140 = vmatpush1.msra.mxu0 %v115
    %141 = vmatprep.subr.mxu0 0.0
    %142 = vmatpush1.msra.mxu0 0.0
    %143 = vmatprep.subr.mxu0 0.0
    %144 = vmatpush1.msra.mxu0 0.0
    %145 = vmatprep.subr.mxu0 0.0
    %146 = vmatpush1.msra.mxu0 0.0
    %147 = vmatprep.subr.mxu0 0.0
    %148 = vmatpush1.msra.mxu0 0.0
    %149 = vmatprep.subr.mxu0 0.0
    %150 = vmatpush1.msra.mxu0 0.0
    %151 = vmatprep.subr.mxu0 0.0
    %152 = vmatpush1.msra.mxu0 0.0
    %153 = vmatprep.subr.mxu0 0.0
    %154 = vmatpush1.msra.mxu0 0.0
    %155 = vmatprep.subr.mxu0 0.0
    %156 = vmatpush1.msra.mxu0 0.0
    %157 = vmatprep.subr.mxu0 0.0
    %158 = vmatpush1.msra.mxu0 0.0
    %159 = vmatprep.subr.mxu0 0.0
    %160 = vmatpush1.msra.mxu0 0.0
    %161 = vmatprep.subr.mxu0 0.0
    %162 = vmatpush1.msra.mxu0 0.0
    %163 = vmatprep.subr.mxu0 0.0
    %164 = vmatpush1.msra.mxu0 0.0
    %165 = vmatprep.subr.mxu0 0.0
    %166 = vmatpush1.msra.mxu0 0.0
    %167 = vmatprep.subr.mxu0 0.0
    %168 = vmatpush1.msra.mxu0 0.0
    %169 = vmatprep.subr.mxu0 0.0
    %170 = vmatpush1.msra.mxu0 0.0
    %171 = vmatprep.subr.mxu0 0.0
    %172 = vmatpush1.msra.mxu0 0.0
    %173 = vmatprep.subr.mxu0 0.0
    %174 = vmatpush1.msra.mxu0 0.0
    %175 = vmatprep.subr.mxu0 0.0
    %176 = vmatpush1.msra.mxu0 0.0
    %177 = vmatprep.subr.mxu0 0.0
    %178 = vmatpush1.msra.mxu0 0.0
    %179 = vmatprep.subr.mxu0 0.0
    %180 = vmatpush1.msra.mxu0 0.0
    %181 = vmatprep.subr.mxu0 0.0
    %182 = vmatpush1.msra.mxu0 0.0
    %183 = vmatprep.subr.mxu0 0.0
    %184 = vmatpush1.msra.mxu0 0.0
    %185 = vmatprep.subr.mxu0 0.0
    %186 = vmatpush1.msra.mxu0 0.0
    %187 = vmatprep.subr.mxu0 0.0
    %188 = vmatpush1.msra.mxu0 0.0
    %189 = vmatprep.mubr.f32.mxu0 0.0
    %190 = vmatmul.mubr.f32.gmra.mrb[0].mxu0 %v123
    %v191 = vpop.f32.mrb[0].mxu0
    %v192 = vadd.f32 %v120, %v191
    %v193 = vpop.f32.mrb[0].mxu0
    %194 = vdwg.mxu0
    %v195 = vand.u32 2147483647, %v192
    %vm196 = vcmask 130048
    %v197 = vsel %vm196, %v195, -inf
    %198 = vmax.xlane.f32.xlu0 %v197
    %v199 = vpop.xlane.xlu0 %198
    %v200 = vrot.slane %v199, 4
    %v201 = vmax.f32 %v199, %v200
    %v202 = vrot.slane %v201, 2
    %v203 = vmax.f32 %v201, %v202
    %v204 = vrot.slane %v203, 1
    %v205 = vmax.f32 %v203, %v204
    %s206 = vtos %v205
    %v207 = vstv %s206
    %v208 = vmax.f32 %v207, 1e-30
    %v209 = vrcp.pop %v208
    %v210 = vmul.f32 %v209, 1.7159
    %v211 = vmul.f32 %v192, %v210
    %v212 = vtanh.pop %v211
    %213 = vst.msk [vmem:[#allocation5] sm:$0xff] %vm196, %v212
    // Predicated region
    $region10: #{embedding_perceptron_forward.1} parent=1 // pred_check
      _
    $region11: #{embedding_perceptron_forward.1} parent=1 // pred_check_branch
      %215 = sbr.rel (0) target = $region13
    $region12: #{embedding_perceptron_forward.1} parent=1 // pred_region
      %s217 = ssub.s32 128, 128
      %218 = vsyncadd [#allocation4], %s217
      %s220 = sshll.u32 [#allocation5], 4
      %s221 = int_to_ptr.vmem [resolvable:$true] %s220
      %223 = dma.vmem_to_hbm [thread:$0]  %s221, 128, %s1, [#allocation4]
    $region13: #{embedding_perceptron_forward.1} parent=1 // pred_fallthru
      _
    // Predicated region
    $region14: #{embedding_perceptron_forward.1} parent=1 // pred_check
      _
    $region15: #{embedding_perceptron_forward.1} parent=1 // pred_check_branch
      %225 = sbr.rel (0) target = $region17
    $region16: #{embedding_perceptron_forward.1} parent=1 // pred_region
      %226 = dma.done [#allocation4], 128
    $region17: #{embedding_perceptron_forward.1} parent=1 // pred_fallthru
      _
    %227 = vsyncpa [#allocation3], 1
    %228 = vsyncpa [#allocation4], 1

</llo_original>
